<compile_context>
chip_gen: v7x
topology: tpu7x:2x2x1
jax: 0.10.0
libtpu: 0.0.40
codegen_flags: <defaults>
</compile_context>

<pallas_src>
import functools

import jax
import jax.numpy as jnp
from jax import lax
from jax.experimental import pallas as pl
from jax.experimental.pallas import tpu as pltpu

_LANE = 128  # TPU lane width


def _leaky_relu(x):
    # nn.LeakyReLU() default negative_slope = 0.01
    return jnp.where(x > 0, x, 0.01 * x)


def _softplus(x):
    # matches torch Softplus (beta=1, threshold=20)
    return jnp.where(x > 20.0, x, jnp.log1p(jnp.exp(jnp.minimum(x, 20.0))))


def _round_up(x, m):
    return (x + m - 1) // m * m


def fcnet_kernel(q_ref, w_pre_ref, b_pre_ref, *rest,
                 num_layers, ld_bias, inp_dim):
    if num_layers > 0:
        w_hid_ref, b_hid_ref, w_heads_ref, b_heads_ref, out_ref = rest
    else:
        w_hid_ref = b_hid_ref = None
        w_heads_ref, b_heads_ref, out_ref = rest

    def mm(x, w, b):
        # Activations/elementwise stay f32; only the MXU operand is cast so
        # bf16-packed weights take the bf16 MXU path with an f32 accumulator.
        return jnp.dot(x.astype(w.dtype), w,
                       preferred_element_type=jnp.float32) + b

    # trunk: pre + LeakyReLU
    x = _leaky_relu(mm(q_ref[...], w_pre_ref[...], b_pre_ref[...]))

    # hidden stack
    if num_layers > 0:
        if num_layers <= 4:
            # shallow: static unroll is fine
            for i in range(num_layers):
                x = _leaky_relu(mm(x, w_hid_ref[i], b_hid_ref[i]))
        else:
            # deep: visible loop with a modest unroll factor — keeps LLO
            # scheduling visibility without the full-unroll vreg blowup.
            def body(i, x):
                return _leaky_relu(mm(x, w_hid_ref[i], b_hid_ref[i]))
            x = lax.fori_loop(0, num_layers, body, x, unroll=2)

    # fused heads: single MXU matmul into a lane-dense (>=128-wide) slab
    h = mm(x, w_heads_ref[...], b_heads_ref[...])   # (TB, padded_head), f32

    # Heads are packed [ld | g | lo | pad]; ld occupies cols [0, inp_dim) of
    # the FIRST 128-lane group only, so the softplus/select epilogue is
    # restricted to that lane-group-aligned slice of h.
    padded_head = out_ref.shape[1]
    hd = h[:, :_LANE]
    col = lax.broadcasted_iota(jnp.int32, hd.shape, 1)
    out_ref[:, :_LANE] = jnp.where(col < inp_dim, _softplus(hd) + ld_bias, hd)
    if padded_head > _LANE:                 # static (trace-time) branch
        out_ref[:, _LANE:] = h[:, _LANE:]


def pack_params(params, inp_dim, weight_dtype=jnp.bfloat16):
    """Pack head weights/biases into one lane-dense slab, layout [ld | g | lo | pad].

    Matmul weights are cast to `weight_dtype` (bf16 default); biases stay f32.
    Call this ONCE outside the hot path (e.g. before a sampling loop)."""
    hid_dim = params["w_pre"].shape[1]
    low_dim = params["w_lo"].shape[1]
    if inp_dim > _LANE:
        raise ValueError("ld head wider than one 128-lane group; the aligned "
                         "epilogue assumes inp_dim <= 128")
    head_dim = low_dim + 2 * inp_dim
    padded_head = _round_up(max(head_dim, _LANE), _LANE)

    w_heads = jnp.zeros((hid_dim, padded_head), jnp.float32)
    w_heads = w_heads.at[:, :inp_dim].set(params["w_ld"])
    w_heads = w_heads.at[:, inp_dim:2 * inp_dim].set(params["w_g"])
    w_heads = w_heads.at[:, 2 * inp_dim:head_dim].set(params["w_lo"])

    b_heads = jnp.zeros((1, padded_head), jnp.float32)
    b_heads = b_heads.at[:, :inp_dim].set(params["b_ld"])
    b_heads = b_heads.at[:, inp_dim:2 * inp_dim].set(params["b_g"])
    b_heads = b_heads.at[:, 2 * inp_dim:head_dim].set(params["b_lo"])

    return dict(
        w_pre=params["w_pre"].astype(weight_dtype),
        b_pre=params["b_pre"].astype(jnp.float32),
        w_hid=params["w_hid"].astype(weight_dtype),      # (num_layers, hid, hid), may be empty
        b_hid=params["b_hid"].astype(jnp.float32),
        w_heads=w_heads.astype(weight_dtype),
        b_heads=b_heads,
        # layout metadata — the wrapper slices lo/ld/g from this, no recompute
        inp_dim=int(inp_dim), low_dim=int(low_dim),
        hid_dim=int(hid_dim), padded_head=int(padded_head),
    )


def fcnet_forward(q, packed, *, ld_bias):
    B, q_dim = q.shape
    inp_dim = packed["inp_dim"]
    low_dim = packed["low_dim"]
    hid_dim = packed["hid_dim"]
    padded_head = packed["padded_head"]
    num_layers = int(packed["w_hid"].shape[0])
    assert q_dim == inp_dim, "q feature dim does not match packed layout"

    # Batch tiling:
    #  * tiny B: single tile (latency-bound, splitting only adds ~0.35us/step)
    #  * mid B: >=2 tiles so the "parallel" axis can shard across v7x's 2 TCs
    #  * large B: 512-row tiles (serial grid on v5e/v6e; bigger tiles -> ~85%
    #    of HBM roofline vs ~63% at 256) while weights stay VMEM-resident
    if B <= 64:
        TB = B
    elif B <= 1024:
        TB = _round_up(pl.cdiv(B, 2), 8)
    else:
        TB = 512
    B_pad = _round_up(B, TB)
    q_in = q if B_pad == B else jnp.pad(q, ((0, B_pad - B), (0, 0)))
    grid = (B_pad // TB,)

    kernel = functools.partial(fcnet_kernel, num_layers=num_layers,
                               ld_bias=ld_bias, inp_dim=inp_dim)

    in_specs = [
        pl.BlockSpec((TB, inp_dim), lambda i: (i, 0)),        # q
        pl.BlockSpec((inp_dim, hid_dim), lambda i: (0, 0)),   # w_pre (resident)
        pl.BlockSpec((1, hid_dim), lambda i: (0, 0)),         # b_pre
    ]
    args = [q_in, packed["w_pre"], packed["b_pre"]]
    if num_layers > 0:   # no dummy hidden-stack DMA when there are no layers
        in_specs += [
            pl.BlockSpec((num_layers, hid_dim, hid_dim), lambda i: (0, 0, 0)),
            pl.BlockSpec((num_layers, 1, hid_dim), lambda i: (0, 0, 0)),
        ]
        args += [packed["w_hid"], packed["b_hid"]]
    in_specs += [
        pl.BlockSpec((hid_dim, padded_head), lambda i: (0, 0)),  # w_heads
        pl.BlockSpec((1, padded_head), lambda i: (0, 0)),        # b_heads
    ]
    args += [packed["w_heads"], packed["b_heads"]]

    # Advisory cost estimate so XLA schedules around this custom call.
    flops = 2 * B_pad * (inp_dim * hid_dim
                         + num_layers * hid_dim * hid_dim
                         + hid_dim * padded_head)
    bytes_in = sum(int(a.size) * a.dtype.itemsize for a in args)
    bytes_out = 4 * B_pad * padded_head
    cost = pl.CostEstimate(
        flops=int(flops),
        transcendentals=int(2 * B_pad * _LANE),   # exp + log1p, ld lane group only
        bytes_accessed=int(bytes_in + bytes_out))

    # Explicit VMEM budget: resident weights (constant index_maps) + double-
    # buffered q/out tiles, with headroom.  Matters most on v7x (64 MiB VMEM).
    weight_bytes = sum(int(a.size) * a.dtype.itemsize for a in args[1:])
    io_bytes = 2 * (TB * inp_dim * 4 + TB * padded_head * 4)
    vmem_limit = int(min(100 << 20,
                         max(16 << 20,
                             2 * weight_bytes + 2 * io_bytes + (2 << 20))))

    out = pl.pallas_call(
        kernel,
        out_shape=jax.ShapeDtypeStruct((B_pad, padded_head), jnp.float32),
        grid_spec=pltpu.PrefetchScalarGridSpec(
            num_scalar_prefetch=0,
            grid=grid,
            in_specs=in_specs,
            out_specs=pl.BlockSpec((TB, padded_head), lambda i: (i, 0)),
        ),
        compiler_params=pltpu.CompilerParams(
            dimension_semantics=("parallel",),   # shard batch tiles across TCs on v7x
            vmem_limit_bytes=vmem_limit),
        cost_estimate=cost,
    )(*args)

    out = out[:B]
    ld = out[:, :inp_dim]
    g = out[:, inp_dim:2 * inp_dim]
    lo = out[:, 2 * inp_dim:2 * inp_dim + low_dim]
    return lo, ld, g


def init_params(key, inp_dim, hid_dim, num_layers):
    """Deterministic init mimicking nn.Linear's U(-1/sqrt(fan_in), 1/sqrt(fan_in))."""
    low_dim = (inp_dim - 1) * inp_dim // 2

    def linear(k, fan_in, fan_out):
        kw, kb = jax.random.split(k)
        bound = 1.0 / jnp.sqrt(fan_in)
        w = jax.random.uniform(kw, (fan_in, fan_out), jnp.float32, -bound, bound)
        b = jax.random.uniform(kb, (1, fan_out), jnp.float32, -bound, bound)
        return w, b

    keys = jax.random.split(key, 4 + max(num_layers, 1))
    w_pre, b_pre = linear(keys[0], inp_dim, hid_dim)
    w_hid_l, b_hid_l = [], []
    for i in range(num_layers):
        w, b = linear(keys[1 + i], hid_dim, hid_dim)
        w_hid_l.append(w)
        b_hid_l.append(b)
    w_hid = (jnp.stack(w_hid_l) if num_layers > 0
             else jnp.zeros((0, hid_dim, hid_dim), jnp.float32))
    b_hid = (jnp.stack(b_hid_l) if num_layers > 0
             else jnp.zeros((0, 1, hid_dim), jnp.float32))
    w_lo, b_lo = linear(keys[1 + num_layers], hid_dim, low_dim)
    w_ld, b_ld = linear(keys[2 + num_layers], hid_dim, inp_dim)
    w_g, b_g = linear(keys[3 + num_layers], hid_dim, inp_dim)
    return dict(w_pre=w_pre, b_pre=b_pre, w_hid=w_hid, b_hid=b_hid,
                w_lo=w_lo, b_lo=b_lo, w_ld=w_ld, b_ld=b_ld, w_g=w_g, b_g=b_g)


def fcnet_reference(q, p, *, num_layers, ld_bias):
    x = _leaky_relu(q @ p["w_pre"] + p["b_pre"])
    for i in range(num_layers):
        x = _leaky_relu(x @ p["w_hid"][i] + p["b_hid"][i])
    lo = x @ p["w_lo"] + p["b_lo"]
    ld = jax.nn.softplus(x @ p["w_ld"] + p["b_ld"]) + ld_bias
    g = x @ p["w_g"] + p["b_g"]
    return lo, ld, g


if __name__ == "__main__":
    inp_dim, hid_dim, num_layers, bias = 16, 32, 2, 0.1
    batch = 8

    key = jax.random.PRNGKey(0)
    k_params, k_q = jax.random.split(key)
    params = init_params(k_params, inp_dim, hid_dim, num_layers)
    q = jax.random.normal(k_q, (batch, inp_dim), jnp.float32)
    low_dim = (inp_dim - 1) * inp_dim // 2

    lo_r, ld_r, g_r = fcnet_reference(q, params, num_layers=num_layers, ld_bias=bias)

    # 1) f32-weight path: exact-semantics check against the reference.
    packed_f32 = pack_params(params, inp_dim, weight_dtype=jnp.float32)
    lo, ld, g = fcnet_forward(q, packed_f32, ld_bias=bias)
    jax.block_until_ready((lo, ld, g))
    assert lo.shape == (batch, low_dim)
    assert ld.shape == (batch, inp_dim) and g.shape == (batch, inp_dim)
    assert jnp.allclose(lo, lo_r, atol=1e-5, rtol=1e-5)
    assert jnp.allclose(ld, ld_r, atol=1e-5, rtol=1e-5)
    assert jnp.allclose(g, g_r, atol=1e-5, rtol=1e-5)

    # 2) bf16-weight path (production default: bf16-native MXU, half the
    #    weight DMA/VMEM).  Looser tolerance for bf16 operand rounding.
    packed_bf16 = pack_params(params, inp_dim)  # weight_dtype=bf16
    lo16, ld16, g16 = fcnet_forward(q, packed_bf16, ld_bias=bias)
    jax.block_until_ready((lo16, ld16, g16))
    assert jnp.allclose(lo16, lo_r, atol=5e-2, rtol=5e-2)
    assert jnp.allclose(ld16, ld_r, atol=5e-2, rtol=5e-2)
    assert jnp.allclose(g16, g_r, atol=5e-2, rtol=5e-2)

    # 3) num_layers == 0 path (hidden-stack inputs omitted entirely).
    params0 = init_params(k_params, inp_dim, hid_dim, 0)
    packed0 = pack_params(params0, inp_dim, weight_dtype=jnp.float32)
    lo0, ld0, g0 = fcnet_forward(q, packed0, ld_bias=bias)
    jax.block_until_ready((lo0, ld0, g0))
    lo0_r, ld0_r, g0_r = fcnet_reference(q, params0, num_layers=0, ld_bias=bias)
    assert jnp.allclose(lo0, lo0_r, atol=1e-5, rtol=1e-5)
    assert jnp.allclose(ld0, ld0_r, atol=1e-5, rtol=1e-5)
    assert jnp.allclose(g0, g0_r, atol=1e-5, rtol=1e-5)

    print("KERNEL_OK")
</pallas_src>

<mosaic_0001>
module attributes {stable_mosaic.version = 11 : i64} {
  func.func @fcnet_kernel(%arg0: i32, %arg1: memref<8x16xf32, #tpu.memory_space<vmem>>, %arg2: memref<16x32xf32, #tpu.memory_space<vmem>>, %arg3: memref<1x32xf32, #tpu.memory_space<vmem>>, %arg4: memref<2x32x32xf32, #tpu.memory_space<vmem>>, %arg5: memref<2x1x32xf32, #tpu.memory_space<vmem>>, %arg6: memref<32x256xf32, #tpu.memory_space<vmem>>, %arg7: memref<1x256xf32, #tpu.memory_space<vmem>>, %arg8: memref<8x256xf32, #tpu.memory_space<vmem>>) attributes {dimension_semantics = [#tpu.dimension_semantics<parallel>], iteration_bounds = array<i64: 1>, scalar_prefetch = 0 : i64, scratch_operands = 0 : i64, tpu.core_type = #tpu.core_type<tc>, window_params = [{transform_indices = @transform_0, window_bounds = array<i64: 8, 16>}, {pipeline_mode = #tpu.pipeline_mode<synchronous>, transform_indices = @transform_1, window_bounds = array<i64: 16, 32>}, {pipeline_mode = #tpu.pipeline_mode<synchronous>, transform_indices = @transform_2, window_bounds = array<i64: 1, 32>}, {pipeline_mode = #tpu.pipeline_mode<synchronous>, transform_indices = @transform_3, window_bounds = array<i64: 2, 32, 32>}, {pipeline_mode = #tpu.pipeline_mode<synchronous>, transform_indices = @transform_4, window_bounds = array<i64: 2, 1, 32>}, {pipeline_mode = #tpu.pipeline_mode<synchronous>, transform_indices = @transform_5, window_bounds = array<i64: 32, 256>}, {pipeline_mode = #tpu.pipeline_mode<synchronous>, transform_indices = @transform_6, window_bounds = array<i64: 1, 256>}, {transform_indices = @transform_7, window_bounds = array<i64: 8, 256>}]} {
    %c0 = arith.constant 0 : index
    %c0_0 = arith.constant 0 : index
    %0 = vector.load %arg1[%c0, %c0_0] : memref<8x16xf32, #tpu.memory_space<vmem>>, vector<8x16xf32>
    %c0_1 = arith.constant 0 : index
    %c0_2 = arith.constant 0 : index
    %1 = vector.load %arg2[%c0_1, %c0_2] : memref<16x32xf32, #tpu.memory_space<vmem>>, vector<16x32xf32>
    %c0_3 = arith.constant 0 : index
    %c0_4 = arith.constant 0 : index
    %2 = vector.load %arg3[%c0_3, %c0_4] : memref<1x32xf32, #tpu.memory_space<vmem>>, vector<1x32xf32>
    %cst = arith.constant dense<0.000000e+00> : vector<8x32xf32>
    %3 = tpu.matmul %0, %1, %cst {dimension_numbers = #tpu.dot_dimension_numbers<[1], [0], [0], [1], [0, 0, 1, 1], [], []>} : vector<8x16xf32>, vector<16x32xf32>, vector<8x32xf32> -> vector<8x32xf32>
    %4 = vector.broadcast %2 : vector<1x32xf32> to vector<8x32xf32>
    %5 = arith.addf %3, %4 : vector<8x32xf32>
    %cst_5 = arith.constant 0.000000e+00 : f32
    %6 = vector.broadcast %cst_5 : f32 to vector<8x32xf32>
    %7 = arith.cmpf ogt, %5, %6 : vector<8x32xf32>
    %cst_6 = arith.constant 0.00999999977 : f32
    %8 = vector.broadcast %cst_6 : f32 to vector<8x32xf32>
    %9 = arith.mulf %8, %5 : vector<8x32xf32>
    %10 = arith.select %7, %5, %9 : vector<8x32xi1>, vector<8x32xf32>
    %c0_7 = arith.constant 0 : index
    %c0_8 = arith.constant 0 : index
    %c0_9 = arith.constant 0 : index
    %11 = vector.load %arg4[%c0_7, %c0_8, %c0_9] : memref<2x32x32xf32, #tpu.memory_space<vmem>>, vector<1x32x32xf32>
    %12 = vector.shape_cast %11 : vector<1x32x32xf32> to vector<32x32xf32>
    %c0_10 = arith.constant 0 : index
    %c0_11 = arith.constant 0 : index
    %c0_12 = arith.constant 0 : index
    %13 = vector.load %arg5[%c0_10, %c0_11, %c0_12] : memref<2x1x32xf32, #tpu.memory_space<vmem>>, vector<1x1x32xf32>
    %14 = vector.shape_cast %13 : vector<1x1x32xf32> to vector<1x32xf32>
    %cst_13 = arith.constant dense<0.000000e+00> : vector<8x32xf32>
    %15 = tpu.matmul %10, %12, %cst_13 {dimension_numbers = #tpu.dot_dimension_numbers<[1], [0], [0], [1], [0, 0, 1, 1], [], []>} : vector<8x32xf32>, vector<32x32xf32>, vector<8x32xf32> -> vector<8x32xf32>
    %16 = vector.broadcast %14 : vector<1x32xf32> to vector<8x32xf32>
    %17 = arith.addf %15, %16 : vector<8x32xf32>
    %cst_14 = arith.constant 0.000000e+00 : f32
    %18 = vector.broadcast %cst_14 : f32 to vector<8x32xf32>
    %19 = arith.cmpf ogt, %17, %18 : vector<8x32xf32>
    %cst_15 = arith.constant 0.00999999977 : f32
    %20 = vector.broadcast %cst_15 : f32 to vector<8x32xf32>
    %21 = arith.mulf %20, %17 : vector<8x32xf32>
    %22 = arith.select %19, %17, %21 : vector<8x32xi1>, vector<8x32xf32>
    %c1 = arith.constant 1 : index
    %c0_16 = arith.constant 0 : index
    %c0_17 = arith.constant 0 : index
    %23 = vector.load %arg4[%c1, %c0_16, %c0_17] : memref<2x32x32xf32, #tpu.memory_space<vmem>>, vector<1x32x32xf32>
    %24 = vector.shape_cast %23 : vector<1x32x32xf32> to vector<32x32xf32>
    %c1_18 = arith.constant 1 : index
    %c0_19 = arith.constant 0 : index
    %c0_20 = arith.constant 0 : index
    %25 = vector.load %arg5[%c1_18, %c0_19, %c0_20] : memref<2x1x32xf32, #tpu.memory_space<vmem>>, vector<1x1x32xf32>
    %26 = vector.shape_cast %25 : vector<1x1x32xf32> to vector<1x32xf32>
    %cst_21 = arith.constant dense<0.000000e+00> : vector<8x32xf32>
    %27 = tpu.matmul %22, %24, %cst_21 {dimension_numbers = #tpu.dot_dimension_numbers<[1], [0], [0], [1], [0, 0, 1, 1], [], []>} : vector<8x32xf32>, vector<32x32xf32>, vector<8x32xf32> -> vector<8x32xf32>
    %28 = vector.broadcast %26 : vector<1x32xf32> to vector<8x32xf32>
    %29 = arith.addf %27, %28 : vector<8x32xf32>
    %cst_22 = arith.constant 0.000000e+00 : f32
    %30 = vector.broadcast %cst_22 : f32 to vector<8x32xf32>
    %31 = arith.cmpf ogt, %29, %30 : vector<8x32xf32>
    %cst_23 = arith.constant 0.00999999977 : f32
    %32 = vector.broadcast %cst_23 : f32 to vector<8x32xf32>
    %33 = arith.mulf %32, %29 : vector<8x32xf32>
    %34 = arith.select %31, %29, %33 : vector<8x32xi1>, vector<8x32xf32>
    %c0_24 = arith.constant 0 : index
    %c0_25 = arith.constant 0 : index
    %35 = vector.load %arg6[%c0_24, %c0_25] : memref<32x256xf32, #tpu.memory_space<vmem>>, vector<32x256xf32>
    %c0_26 = arith.constant 0 : index
    %c0_27 = arith.constant 0 : index
    %36 = vector.load %arg7[%c0_26, %c0_27] : memref<1x256xf32, #tpu.memory_space<vmem>>, vector<1x256xf32>
    %cst_28 = arith.constant dense<0.000000e+00> : vector<8x256xf32>
    %37 = tpu.matmul %34, %35, %cst_28 {dimension_numbers = #tpu.dot_dimension_numbers<[1], [0], [0], [1], [0, 0, 1, 1], [], []>} : vector<8x32xf32>, vector<32x256xf32>, vector<8x256xf32> -> vector<8x256xf32>
    %38 = vector.broadcast %36 : vector<1x256xf32> to vector<8x256xf32>
    %39 = arith.addf %37, %38 : vector<8x256xf32>
    %40 = vector.extract_strided_slice %39 {offsets = [0, 0], sizes = [8, 128], strides = [1, 1]} : vector<8x256xf32> to vector<8x128xf32>
    %41 = tpu.iota {dimensions = array<i32: 1>} : vector<8x128xi32>
    %c16_i32 = arith.constant 16 : i32
    %42 = vector.broadcast %c16_i32 : i32 to vector<8x128xi32>
    %43 = arith.cmpi slt, %41, %42 : vector<8x128xi32>
    %cst_29 = arith.constant 2.000000e+01 : f32
    %44 = vector.broadcast %cst_29 : f32 to vector<8x128xf32>
    %45 = arith.cmpf ogt, %40, %44 : vector<8x128xf32>
    %cst_30 = arith.constant 2.000000e+01 : f32
    %46 = vector.broadcast %cst_30 : f32 to vector<8x128xf32>
    %47 = arith.minimumf %40, %46 : vector<8x128xf32>
    %48 = math.exp %47 : vector<8x128xf32>
    %49 = math.log1p %48 : vector<8x128xf32>
    %50 = arith.select %45, %40, %49 : vector<8x128xi1>, vector<8x128xf32>
    %cst_31 = arith.constant 1.000000e-01 : f32
    %51 = vector.broadcast %cst_31 : f32 to vector<8x128xf32>
    %52 = arith.addf %50, %51 : vector<8x128xf32>
    %53 = arith.select %43, %52, %40 : vector<8x128xi1>, vector<8x128xf32>
    %c0_32 = arith.constant 0 : index
    %c0_33 = arith.constant 0 : index
    %54 = vector.load %arg8[%c0_32, %c0_33] : memref<8x256xf32, #tpu.memory_space<vmem>>, vector<8x128xf32>
    tpu.vector_store %arg8[%c0_32, %c0_33], %53 {strides = array<i32>} : memref<8x256xf32, #tpu.memory_space<vmem>>, vector<8x128xf32>,
    %55 = vector.extract_strided_slice %39 {offsets = [0, 128], sizes = [8, 128], strides = [1, 1]} : vector<8x256xf32> to vector<8x128xf32>
    %c0_34 = arith.constant 0 : index
    %c128 = arith.constant 128 : index
    %56 = vector.load %arg8[%c0_34, %c128] : memref<8x256xf32, #tpu.memory_space<vmem>>, vector<8x128xf32>
    tpu.vector_store %arg8[%c0_34, %c128], %55 {strides = array<i32>} : memref<8x256xf32, #tpu.memory_space<vmem>>, vector<8x128xf32>,
    return
  }
  func.func @transform_0(%arg0: i32) -> (i32, i32) {
    %c0_i32 = arith.constant 0 : i32
    %c0_i32_0 = arith.constant 0 : i32
    return %arg0, %c0_i32 : i32, i32
  }
  func.func @transform_1(%arg0: i32) -> (i32, i32) {
    %c0_i32 = arith.constant 0 : i32
    %c0_i32_0 = arith.constant 0 : i32
    %c0_i32_1 = arith.constant 0 : i32
    return %c0_i32, %c0_i32_0 : i32, i32
  }
  func.func @transform_2(%arg0: i32) -> (i32, i32) {
    %c0_i32 = arith.constant 0 : i32
    %c0_i32_0 = arith.constant 0 : i32
    %c0_i32_1 = arith.constant 0 : i32
    return %c0_i32, %c0_i32_0 : i32, i32
  }
  func.func @transform_3(%arg0: i32) -> (i32, i32, i32) {
    %c0_i32 = arith.constant 0 : i32
    %c0_i32_0 = arith.constant 0 : i32
    %c0_i32_1 = arith.constant 0 : i32
    %c0_i32_2 = arith.constant 0 : i32
    return %c0_i32, %c0_i32_0, %c0_i32_1 : i32, i32, i32
  }
  func.func @transform_4(%arg0: i32) -> (i32, i32, i32) {
    %c0_i32 = arith.constant 0 : i32
    %c0_i32_0 = arith.constant 0 : i32
    %c0_i32_1 = arith.constant 0 : i32
    %c0_i32_2 = arith.constant 0 : i32
    return %c0_i32, %c0_i32_0, %c0_i32_1 : i32, i32, i32
  }
  func.func @transform_5(%arg0: i32) -> (i32, i32) {
    %c0_i32 = arith.constant 0 : i32
    %c0_i32_0 = arith.constant 0 : i32
    %c0_i32_1 = arith.constant 0 : i32
    return %c0_i32, %c0_i32_0 : i32, i32
  }
  func.func @transform_6(%arg0: i32) -> (i32, i32) {
    %c0_i32 = arith.constant 0 : i32
    %c0_i32_0 = arith.constant 0 : i32
    %c0_i32_1 = arith.constant 0 : i32
    return %c0_i32, %c0_i32_0 : i32, i32
  }
  func.func @transform_7(%arg0: i32) -> (i32, i32) {
    %c0_i32 = arith.constant 0 : i32
    %c0_i32_0 = arith.constant 0 : i32
    return %arg0, %c0_i32 : i32, i32
  }
}

</mosaic_0001>

<llo_original>
// kernel: tpu_custom_call.1
$region0: #{tpu_custom_call.1}
  #allocation0 [shape = 'u32[]', space=smem, size = 0x4, offset = 0x4, fixed_abs, tag = 'smem constant byte address 0x4 - core index']
  #allocation1 [shape = 'u32[144,128]{1,0:T(1,128)}', space=vmem, size = 0x12000, scoped, tag = 'internal scratch']
  %s0 = inlined_call_operand.hbm [shape: f32[8,16], index: 0, kind: input, shape index: {}]
  %s1 = inlined_call_operand.hbm [shape: f32[16,32], index: 1, kind: input, shape index: {}]
  %s2 = inlined_call_operand.vmem [shape: f32[1,32], index: 2, kind: input, shape index: {}]
  %s3 = inlined_call_operand.hbm [shape: f32[2,32,32], index: 3, kind: input, shape index: {}]
  %s4 = inlined_call_operand.vmem [shape: f32[2,1,32], index: 4, kind: input, shape index: {}]
  %s5 = inlined_call_operand.hbm [shape: f32[32,256], index: 5, kind: input, shape index: {}]
  %s6 = inlined_call_operand.vmem [shape: f32[1,256], index: 6, kind: input, shape index: {}]
  %s7 = inlined_call_operand.hbm [shape: f32[8,256], index: 7, kind: output, shape index: {}]
  %s8 = sld [smem:[#allocation0]]
  $region54: #{tpu_custom_call.1} parent=0
    _
  %s10 = ssub.s32 1, %s8
  %s11 = scalar_select 0, %s10, %s8
  $region1: #{tpu_custom_call.1} parent=0
    #allocation2 [shape = 'u8[4096]{0}', space=vmem, size = 0x1000, scoped, tag = 'input window, operand 0, single buffered']
    #allocation3 [shape = 's32[1]{0}', space=sflag, size = 0x4, scoped, tag = 'scoped memory for tpu_custom_call.1']
    #allocation4 [shape = 's32[1]{0}', space=sflag, size = 0x4, scoped, tag = 'scoped memory for tpu_custom_call.1']
    #allocation5 [shape = 'u8[8192]{0}', space=vmem, size = 0x2000, scoped, tag = 'input window, operand 1, single buffered']
    #allocation6 [shape = 's32[1]{0}', space=sflag, size = 0x4, scoped, tag = 'scoped memory for tpu_custom_call.1']
    #allocation7 [shape = 'u8[32768]{0}', space=vmem, size = 0x8000, scoped, tag = 'input window, operand 3, single buffered']
    #allocation8 [shape = 'u8[32768]{0}', space=vmem, size = 0x8000, scoped, tag = 'input window, operand 5, single buffered']
    #allocation9 [shape = 's32[1]{0}', space=sflag, size = 0x4, scoped, tag = 'scoped memory for tpu_custom_call.1']
    #allocation10 [shape = 'u8[8192]{0}', space=vmem, size = 0x2000, scoped, tag = 'output window, operand 0, single buffered']
    %12 = vsyncpa [#allocation3], 0
    %13 = vsyncpa [#allocation6], 0
    %14 = vsyncpa [#allocation9], 0
    %15 = vsyncpa [#allocation4], 0
    // Predicated region
    $region2: #{tpu_custom_call.1} parent=1 // pred_check
      _
    $region3: #{tpu_custom_call.1} parent=1 // pred_check_branch
      %17 = sbr.rel (0) target = $region5
    $region4: #{tpu_custom_call.1} parent=1 // pred_region
      %s19 = ssub.s32 128, 128
      %20 = vsyncadd [#allocation3], %s19
      %s22 = sshll.u32 [#allocation2], 4
      %s23 = int_to_ptr.vmem [resolvable:$true] %s22
      %25 = dma.hbm_to_vmem [thread:$0]  %s0, 128, %s23, [#allocation3]
    $region5: #{tpu_custom_call.1} parent=1 // pred_fallthru
      _
    // Predicated region
    $region6: #{tpu_custom_call.1} parent=1 // pred_check
      _
    $region7: #{tpu_custom_call.1} parent=1 // pred_check_branch
      %27 = sbr.rel (0) target = $region9
    $region8: #{tpu_custom_call.1} parent=1 // pred_region
      %s29 = ssub.s32 256, 256
      %30 = vsyncadd [#allocation6], %s29
      %s31 = sshll.u32 [#allocation5], 4
      %s32 = int_to_ptr.vmem [resolvable:$true] %s31
      %37 = dma.hbm_to_vmem [thread:$0]  %s1, 256, %s32, [#allocation6], 128, 128, 8
    $region9: #{tpu_custom_call.1} parent=1 // pred_fallthru
      _
    // Predicated region
    $region10: #{tpu_custom_call.1} parent=1 // pred_check
      _
    $region11: #{tpu_custom_call.1} parent=1 // pred_check_branch
      %39 = sbr.rel (0) target = $region13
    $region12: #{tpu_custom_call.1} parent=1 // pred_region
      _
    $region13: #{tpu_custom_call.1} parent=1 // pred_fallthru
      _
    // Predicated region
    $region14: #{tpu_custom_call.1} parent=1 // pred_check
      _
    $region15: #{tpu_custom_call.1} parent=1 // pred_check_branch
      %41 = sbr.rel (0) target = $region17
    $region16: #{tpu_custom_call.1} parent=1 // pred_region
      %s43 = ssub.s32 1024, 1024
      %44 = vsyncadd [#allocation6], %s43
      %s45 = sshll.u32 [#allocation7], 4
      %s46 = int_to_ptr.vmem [resolvable:$true] %s45
      %51 = dma.hbm_to_vmem [thread:$0]  %s3, 1024, %s46, [#allocation6], 128, 128, 8
    $region17: #{tpu_custom_call.1} parent=1 // pred_fallthru
      _
    // Predicated region
    $region18: #{tpu_custom_call.1} parent=1 // pred_check
      _
    $region19: #{tpu_custom_call.1} parent=1 // pred_check_branch
      %53 = sbr.rel (0) target = $region21
    $region20: #{tpu_custom_call.1} parent=1 // pred_region
      _
    $region21: #{tpu_custom_call.1} parent=1 // pred_fallthru
      _
    // Predicated region
    $region22: #{tpu_custom_call.1} parent=1 // pred_check
      _
    $region23: #{tpu_custom_call.1} parent=1 // pred_check_branch
      %55 = sbr.rel (0) target = $region25
    $region24: #{tpu_custom_call.1} parent=1 // pred_region
      %s57 = ssub.s32 1024, 1024
      %58 = vsyncadd [#allocation9], %s57
      %s59 = sshll.u32 [#allocation8], 4
      %s60 = int_to_ptr.vmem [resolvable:$true] %s59
      %65 = dma.hbm_to_vmem [thread:$0]  %s5, 1024, %s60, [#allocation9], 256, 256, 16
    $region25: #{tpu_custom_call.1} parent=1 // pred_fallthru
      _
    // Predicated region
    $region26: #{tpu_custom_call.1} parent=1 // pred_check
      _
    $region27: #{tpu_custom_call.1} parent=1 // pred_check_branch
      %67 = sbr.rel (0) target = $region29
    $region28: #{tpu_custom_call.1} parent=1 // pred_region
      _
    $region29: #{tpu_custom_call.1} parent=1 // pred_fallthru
      _
    // Predicated region
    $region30: #{tpu_custom_call.1} parent=1 // pred_check
      _
    $region31: #{tpu_custom_call.1} parent=1 // pred_check_branch
      %69 = sbr.rel (0) target = $region33
    $region32: #{tpu_custom_call.1} parent=1 // pred_region
      %70 = dma.done [#allocation3], 128
    $region33: #{tpu_custom_call.1} parent=1 // pred_fallthru
      _
    // Predicated region
    $region34: #{tpu_custom_call.1} parent=1 // pred_check
      _
    $region35: #{tpu_custom_call.1} parent=1 // pred_check_branch
      %72 = sbr.rel (0) target = $region37
    $region36: #{tpu_custom_call.1} parent=1 // pred_region
      %73 = dma.done [#allocation6], 256
    $region37: #{tpu_custom_call.1} parent=1 // pred_fallthru
      _
    // Predicated region
    $region38: #{tpu_custom_call.1} parent=1 // pred_check
      _
    $region39: #{tpu_custom_call.1} parent=1 // pred_check_branch
      %75 = sbr.rel (0) target = $region41
    $region40: #{tpu_custom_call.1} parent=1 // pred_region
      %76 = dma.done [#allocation6], 1024
    $region41: #{tpu_custom_call.1} parent=1 // pred_fallthru
      _
    // Predicated region
    $region42: #{tpu_custom_call.1} parent=1 // pred_check
      _
    $region43: #{tpu_custom_call.1} parent=1 // pred_check_branch
      %78 = sbr.rel (0) target = $region45
    $region44: #{tpu_custom_call.1} parent=1 // pred_region
      %79 = dma.done [#allocation9], 1024
    $region45: #{tpu_custom_call.1} parent=1 // pred_fallthru
      _
    %v80 = vld [vmem:[#allocation2] sm:$0xff]
    %v81 = vld [vmem:[#allocation5] sm:$0xff]
    %v82 = vld [vmem:[#allocation5 + $0x8] sm:$0xff]
    %v83 = vld [vmem:[%s2] sm:$0x1]
    %v85 = vlaneseq
    %v86 = vshrl.u32 %v85, 7
    %v87 = vsub.s32 0, %v86
    %v88 = vrot.slane %v83, %v87
    %vm90 = vcmask 130048
    %v92 = vsel %vm90, %v80, 0
    %94 = vmatprep.subr.mxu0 0.0
    %95 = vmatpush1.msra.mxu0 %v81
    %96 = vmatprep.subr.mxu0 0.0
    %97 = vmatpush1.msra.mxu0 %v82
    %98 = vmatprep.subr.mxu0 0.0
    %99 = vmatpush1.msra.mxu0 0.0
    %100 = vmatprep.subr.mxu0 0.0
    %101 = vmatpush1.msra.mxu0 0.0
    %102 = vmatprep.subr.mxu0 0.0
    %103 = vmatpush1.msra.mxu0 0.0
    %104 = vmatprep.subr.mxu0 0.0
    %105 = vmatpush1.msra.mxu0 0.0
    %106 = vmatprep.subr.mxu0 0.0
    %107 = vmatpush1.msra.mxu0 0.0
    %108 = vmatprep.subr.mxu0 0.0
    %109 = vmatpush1.msra.mxu0 0.0
    %110 = vmatprep.subr.mxu0 0.0
    %111 = vmatpush1.msra.mxu0 0.0
    %112 = vmatprep.subr.mxu0 0.0
    %113 = vmatpush1.msra.mxu0 0.0
    %114 = vmatprep.subr.mxu0 0.0
    %115 = vmatpush1.msra.mxu0 0.0
    %116 = vmatprep.subr.mxu0 0.0
    %117 = vmatpush1.msra.mxu0 0.0
    %118 = vmatprep.subr.mxu0 0.0
    %119 = vmatpush1.msra.mxu0 0.0
    %120 = vmatprep.subr.mxu0 0.0
    %121 = vmatpush1.msra.mxu0 0.0
    %122 = vmatprep.subr.mxu0 0.0
    %123 = vmatpush1.msra.mxu0 0.0
    %124 = vmatprep.subr.mxu0 0.0
    %125 = vmatpush1.msra.mxu0 0.0
    %126 = vmatprep.subr.mxu0 0.0
    %127 = vmatpush1.msra.mxu0 0.0
    %128 = vmatprep.subr.mxu0 0.0
    %129 = vmatpush1.msra.mxu0 0.0
    %130 = vmatprep.subr.mxu0 0.0
    %131 = vmatpush1.msra.mxu0 0.0
    %132 = vmatprep.subr.mxu0 0.0
    %133 = vmatpush1.msra.mxu0 0.0
    %134 = vmatprep.subr.mxu0 0.0
    %135 = vmatpush1.msra.mxu0 0.0
    %136 = vmatprep.subr.mxu0 0.0
    %137 = vmatpush1.msra.mxu0 0.0
    %138 = vmatprep.subr.mxu0 0.0
    %139 = vmatpush1.msra.mxu0 0.0
    %140 = vmatprep.subr.mxu0 0.0
    %141 = vmatpush1.msra.mxu0 0.0
    %142 = vmatprep.subr.mxu0 0.0
    %143 = vmatpush1.msra.mxu0 0.0
    %144 = vmatprep.subr.mxu0 0.0
    %145 = vmatpush1.msra.mxu0 0.0
    %146 = vmatprep.subr.mxu0 0.0
    %147 = vmatpush1.msra.mxu0 0.0
    %148 = vmatprep.subr.mxu0 0.0
    %149 = vmatpush1.msra.mxu0 0.0
    %150 = vmatprep.subr.mxu0 0.0
    %151 = vmatpush1.msra.mxu0 0.0
    %152 = vmatprep.subr.mxu0 0.0
    %153 = vmatpush1.msra.mxu0 0.0
    %154 = vmatprep.subr.mxu0 0.0
    %155 = vmatpush1.msra.mxu0 0.0
    %156 = vmatprep.subr.mxu0 0.0
    %157 = vmatpush1.msra.mxu0 0.0
    %158 = vmatprep.mubr.f32.mxu0 0.0
    %159 = vmatmul.mubr.f32.gmra.mrb[0].mxu0 %v92
    %v160 = vpop.f32.mrb[0].mxu0
    %v161 = vadd.f32 %v88, %v160
    %v162 = vpop.f32.mrb[0].mxu0
    %163 = vdwg.mxu0
    %vm164 = vcmp.gt.f32.partialorder %v161, 0.0
    %v165 = vmul.f32 %v161, 0.01
    %v166 = vsel %vm164, %v161, %v165
    %v167 = vld [vmem:[#allocation7] sm:$0xff]
    %v168 = vld [vmem:[#allocation7 + $0x8] sm:$0xff]
    %v169 = vld [vmem:[#allocation7 + $0x10] sm:$0xff]
    %v170 = vld [vmem:[#allocation7 + $0x18] sm:$0xff]
    %v171 = vld [vmem:[%s4] sm:$0x1]
    %v173 = vlaneseq
    %v174 = vshrl.u32 %v173, 7
    %v175 = vsub.s32 0, %v174
    %v176 = vrot.slane %v171, %v175
    %vm178 = vcmask 261120
    %v180 = vsel %vm178, %v166, 0
    %182 = vmatprep.subr.mxu0 0.0
    %183 = vmatpush1.msra.mxu0 %v167
    %184 = vmatprep.subr.mxu0 0.0
    %185 = vmatpush1.msra.mxu0 %v168
    %186 = vmatprep.subr.mxu0 0.0
    %187 = vmatpush1.msra.mxu0 %v169
    %188 = vmatprep.subr.mxu0 0.0
    %189 = vmatpush1.msra.mxu0 %v170
    %190 = vmatprep.subr.mxu0 0.0
    %191 = vmatpush1.msra.mxu0 0.0
    %192 = vmatprep.subr.mxu0 0.0
    %193 = vmatpush1.msra.mxu0 0.0
    %194 = vmatprep.subr.mxu0 0.0
    %195 = vmatpush1.msra.mxu0 0.0
    %196 = vmatprep.subr.mxu0 0.0
    %197 = vmatpush1.msra.mxu0 0.0
    %198 = vmatprep.subr.mxu0 0.0
    %199 = vmatpush1.msra.mxu0 0.0
    %200 = vmatprep.subr.mxu0 0.0
    %201 = vmatpush1.msra.mxu0 0.0
    %202 = vmatprep.subr.mxu0 0.0
    %203 = vmatpush1.msra.mxu0 0.0
    %204 = vmatprep.subr.mxu0 0.0
    %205 = vmatpush1.msra.mxu0 0.0
    %206 = vmatprep.subr.mxu0 0.0
    %207 = vmatpush1.msra.mxu0 0.0
    %208 = vmatprep.subr.mxu0 0.0
    %209 = vmatpush1.msra.mxu0 0.0
    %210 = vmatprep.subr.mxu0 0.0
    %211 = vmatpush1.msra.mxu0 0.0
    %212 = vmatprep.subr.mxu0 0.0
    %213 = vmatpush1.msra.mxu0 0.0
    %214 = vmatprep.subr.mxu0 0.0
    %215 = vmatpush1.msra.mxu0 0.0
    %216 = vmatprep.subr.mxu0 0.0
    %217 = vmatpush1.msra.mxu0 0.0
    %218 = vmatprep.subr.mxu0 0.0
    %219 = vmatpush1.msra.mxu0 0.0
    %220 = vmatprep.subr.mxu0 0.0
    %221 = vmatpush1.msra.mxu0 0.0
    %222 = vmatprep.subr.mxu0 0.0
    %223 = vmatpush1.msra.mxu0 0.0
    %224 = vmatprep.subr.mxu0 0.0
    %225 = vmatpush1.msra.mxu0 0.0
    %226 = vmatprep.subr.mxu0 0.0
    %227 = vmatpush1.msra.mxu0 0.0
    %228 = vmatprep.subr.mxu0 0.0
    %229 = vmatpush1.msra.mxu0 0.0
    %230 = vmatprep.subr.mxu0 0.0
    %231 = vmatpush1.msra.mxu0 0.0
    %232 = vmatprep.subr.mxu0 0.0
    %233 = vmatpush1.msra.mxu0 0.0
    %234 = vmatprep.subr.mxu0 0.0
    %235 = vmatpush1.msra.mxu0 0.0
    %236 = vmatprep.subr.mxu0 0.0
    %237 = vmatpush1.msra.mxu0 0.0
    %238 = vmatprep.subr.mxu0 0.0
    %239 = vmatpush1.msra.mxu0 0.0
    %240 = vmatprep.subr.mxu0 0.0
    %241 = vmatpush1.msra.mxu0 0.0
    %242 = vmatprep.subr.mxu0 0.0
    %243 = vmatpush1.msra.mxu0 0.0
    %244 = vmatprep.subr.mxu0 0.0
    %245 = vmatpush1.msra.mxu0 0.0
    %246 = vmatprep.mubr.f32.mxu0 0.0
    %247 = vmatmul.mubr.f32.gmra.mrb[0].mxu0 %v180
    %v248 = vpop.f32.mrb[0].mxu0
    %v249 = vadd.f32 %v176, %v248
    %v250 = vpop.f32.mrb[0].mxu0
    %251 = vdwg.mxu0
    %vm252 = vcmp.gt.f32.partialorder %v249, 0.0
    %v253 = vmul.f32 %v249, 0.01
    %v254 = vsel %vm252, %v249, %v253
    %s255 = scalar_lea.vmem [#allocation7], 32
    %v256 = vld [vmem:[%s255] sm:$0xff]
    %v257 = vld [vmem:[%s255 + $0x8] sm:$0xff]
    %v258 = vld [vmem:[%s255 + $0x10] sm:$0xff]
    %v259 = vld [vmem:[%s255 + $0x18] sm:$0xff]
    %s260 = scalar_lea.vmem %s4, 1
    %v261 = vld [vmem:[%s260] sm:$0x1]
    %v263 = vlaneseq
    %v264 = vshrl.u32 %v263, 7
    %v265 = vsub.s32 0, %v264
    %v266 = vrot.slane %v261, %v265
    %v269 = vsel %vm178, %v254, 0
    %271 = vmatprep.subr.mxu0 0.0
    %272 = vmatpush1.msra.mxu0 %v256
    %273 = vmatprep.subr.mxu0 0.0
    %274 = vmatpush1.msra.mxu0 %v257
    %275 = vmatprep.subr.mxu0 0.0
    %276 = vmatpush1.msra.mxu0 %v258
    %277 = vmatprep.subr.mxu0 0.0
    %278 = vmatpush1.msra.mxu0 %v259
    %279 = vmatprep.subr.mxu0 0.0
    %280 = vmatpush1.msra.mxu0 0.0
    %281 = vmatprep.subr.mxu0 0.0
    %282 = vmatpush1.msra.mxu0 0.0
    %283 = vmatprep.subr.mxu0 0.0
    %284 = vmatpush1.msra.mxu0 0.0
    %285 = vmatprep.subr.mxu0 0.0
    %286 = vmatpush1.msra.mxu0 0.0
    %287 = vmatprep.subr.mxu0 0.0
    %288 = vmatpush1.msra.mxu0 0.0
    %289 = vmatprep.subr.mxu0 0.0
    %290 = vmatpush1.msra.mxu0 0.0
    %291 = vmatprep.subr.mxu0 0.0
    %292 = vmatpush1.msra.mxu0 0.0
    %293 = vmatprep.subr.mxu0 0.0
    %294 = vmatpush1.msra.mxu0 0.0
    %295 = vmatprep.subr.mxu0 0.0
    %296 = vmatpush1.msra.mxu0 0.0
    %297 = vmatprep.subr.mxu0 0.0
    %298 = vmatpush1.msra.mxu0 0.0
    %299 = vmatprep.subr.mxu0 0.0
    %300 = vmatpush1.msra.mxu0 0.0
    %301 = vmatprep.subr.mxu0 0.0
    %302 = vmatpush1.msra.mxu0 0.0
    %303 = vmatprep.subr.mxu0 0.0
    %304 = vmatpush1.msra.mxu0 0.0
    %305 = vmatprep.subr.mxu0 0.0
    %306 = vmatpush1.msra.mxu0 0.0
    %307 = vmatprep.subr.mxu0 0.0
    %308 = vmatpush1.msra.mxu0 0.0
    %309 = vmatprep.subr.mxu0 0.0
    %310 = vmatpush1.msra.mxu0 0.0
    %311 = vmatprep.subr.mxu0 0.0
    %312 = vmatpush1.msra.mxu0 0.0
    %313 = vmatprep.subr.mxu0 0.0
    %314 = vmatpush1.msra.mxu0 0.0
    %315 = vmatprep.subr.mxu0 0.0
    %316 = vmatpush1.msra.mxu0 0.0
    %317 = vmatprep.subr.mxu0 0.0
    %318 = vmatpush1.msra.mxu0 0.0
    %319 = vmatprep.subr.mxu0 0.0
    %320 = vmatpush1.msra.mxu0 0.0
    %321 = vmatprep.subr.mxu0 0.0
    %322 = vmatpush1.msra.mxu0 0.0
    %323 = vmatprep.subr.mxu0 0.0
    %324 = vmatpush1.msra.mxu0 0.0
    %325 = vmatprep.subr.mxu0 0.0
    %326 = vmatpush1.msra.mxu0 0.0
    %327 = vmatprep.subr.mxu0 0.0
    %328 = vmatpush1.msra.mxu0 0.0
    %329 = vmatprep.subr.mxu0 0.0
    %330 = vmatpush1.msra.mxu0 0.0
    %331 = vmatprep.subr.mxu0 0.0
    %332 = vmatpush1.msra.mxu0 0.0
    %333 = vmatprep.subr.mxu0 0.0
    %334 = vmatpush1.msra.mxu0 0.0
    %335 = vmatprep.mubr.f32.mxu0 0.0
    %336 = vmatmul.mubr.f32.gmra.mrb[0].mxu0 %v269
    %v337 = vpop.f32.mrb[0].mxu0
    %v338 = vadd.f32 %v266, %v337
    %v339 = vpop.f32.mrb[0].mxu0
    %340 = vdwg.mxu0
    %vm341 = vcmp.gt.f32.partialorder %v338, 0.0
    %v342 = vmul.f32 %v338, 0.01
    %v343 = vsel %vm341, %v338, %v342
    %v344 = vld [vmem:[#allocation8] sm:$0xff]
    %v345 = vld [vmem:[#allocation8 + $0x8] sm:$0xff]
    %v346 = vld [vmem:[#allocation8 + $0x10] sm:$0xff]
    %v347 = vld [vmem:[#allocation8 + $0x18] sm:$0xff]
    %v348 = vld [vmem:[#allocation8 + $0x20] sm:$0xff]
    %v349 = vld [vmem:[#allocation8 + $0x28] sm:$0xff]
    %v350 = vld [vmem:[#allocation8 + $0x30] sm:$0xff]
    %v351 = vld [vmem:[#allocation8 + $0x38] sm:$0xff]
    %v352 = vld [vmem:[%s6] sm:$0x3]
    %v354 = vlaneseq
    %v355 = vshrl.u32 %v354, 7
    %v356 = vsub.s32 0, %v355
    %v357 = vrot.slane %v352, %v356
    %v358 = vlaneseq
    %v359 = vshrl.u32 %v358, 7
    %v360 = vsub.s32 1, %v359
    %v361 = vrot.slane %v352, %v360
    %v365 = vsel %vm178, %v343, 0
    %367 = vmatprep.subr.mxu0 %v345
    %368 = vmatpush1.msra.mxu0 %v344
    %369 = vmatprep.subr.mxu0 %v347
    %370 = vmatpush1.msra.mxu0 %v346
    %371 = vmatprep.subr.mxu0 %v349
    %372 = vmatpush1.msra.mxu0 %v348
    %373 = vmatprep.subr.mxu0 %v351
    %374 = vmatpush1.msra.mxu0 %v350
    %375 = vmatprep.subr.mxu0 0.0
    %376 = vmatpush1.msra.mxu0 0.0
    %377 = vmatprep.subr.mxu0 0.0
    %378 = vmatpush1.msra.mxu0 0.0
    %379 = vmatprep.subr.mxu0 0.0
    %380 = vmatpush1.msra.mxu0 0.0
    %381 = vmatprep.subr.mxu0 0.0
    %382 = vmatpush1.msra.mxu0 0.0
    %383 = vmatprep.subr.mxu0 0.0
    %384 = vmatpush1.msra.mxu0 0.0
    %385 = vmatprep.subr.mxu0 0.0
    %386 = vmatpush1.msra.mxu0 0.0
    %387 = vmatprep.subr.mxu0 0.0
    %388 = vmatpush1.msra.mxu0 0.0
    %389 = vmatprep.subr.mxu0 0.0
    %390 = vmatpush1.msra.mxu0 0.0
    %391 = vmatprep.subr.mxu0 0.0
    %392 = vmatpush1.msra.mxu0 0.0
    %393 = vmatprep.subr.mxu0 0.0
    %394 = vmatpush1.msra.mxu0 0.0
    %395 = vmatprep.subr.mxu0 0.0
    %396 = vmatpush1.msra.mxu0 0.0
    %397 = vmatprep.subr.mxu0 0.0
    %398 = vmatpush1.msra.mxu0 0.0
    %399 = vmatprep.subr.mxu0 0.0
    %400 = vmatpush1.msra.mxu0 0.0
    %401 = vmatprep.subr.mxu0 0.0
    %402 = vmatpush1.msra.mxu0 0.0
    %403 = vmatprep.subr.mxu0 0.0
    %404 = vmatpush1.msra.mxu0 0.0
    %405 = vmatprep.subr.mxu0 0.0
    %406 = vmatpush1.msra.mxu0 0.0
    %407 = vmatprep.subr.mxu0 0.0
    %408 = vmatpush1.msra.mxu0 0.0
    %409 = vmatprep.subr.mxu0 0.0
    %410 = vmatpush1.msra.mxu0 0.0
    %411 = vmatprep.subr.mxu0 0.0
    %412 = vmatpush1.msra.mxu0 0.0
    %413 = vmatprep.subr.mxu0 0.0
    %414 = vmatpush1.msra.mxu0 0.0
    %415 = vmatprep.subr.mxu0 0.0
    %416 = vmatpush1.msra.mxu0 0.0
    %417 = vmatprep.subr.mxu0 0.0
    %418 = vmatpush1.msra.mxu0 0.0
    %419 = vmatprep.subr.mxu0 0.0
    %420 = vmatpush1.msra.mxu0 0.0
    %421 = vmatprep.subr.mxu0 0.0
    %422 = vmatpush1.msra.mxu0 0.0
    %423 = vmatprep.subr.mxu0 0.0
    %424 = vmatpush1.msra.mxu0 0.0
    %425 = vmatprep.subr.mxu0 0.0
    %426 = vmatpush1.msra.mxu0 0.0
    %427 = vmatprep.subr.mxu0 0.0
    %428 = vmatpush1.msra.mxu0 0.0
    %429 = vmatprep.subr.mxu0 0.0
    %430 = vmatpush1.msra.mxu0 0.0
    %431 = vmatprep.mubr.f32.mxu0 0.0
    %432 = vmatmul.mubr.f32.gmra.mrb[0].mxu0 %v365
    %v433 = vpop.f32.mrb[0].mxu0
    %v434 = vadd.f32 %v357, %v433
    %v435 = vpop.f32.mrb[0].mxu0
    %v436 = vadd.f32 %v361, %v435
    %437 = vdwg.mxu0
    %v438 = vlaneseq
    %v439 = vand.u32 %v438, 127
    %vm440 = vcmp.lt.s32.totalorder %v439, 16
    %vm441 = vcmp.gt.f32.partialorder %v434, 20.0
    %v442 = vmin.f32 %v434, 20.0
    %v443 = vmul.f32 %v442, 1.442695
    %v444 = vpow.pop %v443
    %v445 = vadd.f32 %v444, 1.0
    %v446 = vlog2.pop %v445
    %v447 = vmul.f32 %v446, 0.6931472
    %v448 = vmul.f32 -0.5, %v444
    %v449 = vadd.f32 %v448, 1.0
    %v450 = vmul.f32 %v449, %v444
    %v451 = vand.u32 2147483647, %v444
    %vm452 = vcmp.lt.f32.partialorder %v451, 0.0004427343
    %v453 = vsel %vm452, %v450, %v447
    %v454 = vsel %vm441, %v434, %v453
    %v455 = vadd.f32 %v454, 0.1
    %v456 = vsel %vm440, %v455, %v434
    %457 = vst [vmem:[#allocation10] sm:$0xff] %v456
    %458 = vst [vmem:[#allocation10 + $0x8] sm:$0xff] %v436
    // Predicated region
    $region46: #{tpu_custom_call.1} parent=1 // pred_check
      _
    $region47: #{tpu_custom_call.1} parent=1 // pred_check_branch
      %460 = sbr.rel (0) target = $region49
    $region48: #{tpu_custom_call.1} parent=1 // pred_region
      %s462 = ssub.s32 256, 256
      %463 = vsyncadd [#allocation4], %s462
      %s465 = sshll.u32 [#allocation10], 4
      %s466 = int_to_ptr.vmem [resolvable:$true] %s465
      %468 = dma.vmem_to_hbm [thread:$0]  %s466, 256, %s7, [#allocation4]
    $region49: #{tpu_custom_call.1} parent=1 // pred_fallthru
      _
    // Predicated region
    $region50: #{tpu_custom_call.1} parent=1 // pred_check
      _
    $region51: #{tpu_custom_call.1} parent=1 // pred_check_branch
      %470 = sbr.rel (0) target = $region53
    $region52: #{tpu_custom_call.1} parent=1 // pred_region
      %471 = dma.done [#allocation4], 256
    $region53: #{tpu_custom_call.1} parent=1 // pred_fallthru
      _
    %472 = vsyncpa [#allocation3], 1
    %473 = vsyncpa [#allocation6], 1
    %474 = vsyncpa [#allocation9], 1
    %475 = vsyncpa [#allocation4], 1

</llo_original>
